<compile_context>
chip_gen: v5e
topology: v5e:2x2
jax: 0.10.0
libtpu: 0.0.40
codegen_flags: <defaults>
</compile_context>

<pallas_src>
import jax
import jax.numpy as jnp
from jax.experimental import pallas as pl
from jax.experimental.pallas import tpu as pltpu


def _round_up(x, m):
    return ((x + m - 1) // m) * m


def _embed_onehot_kernel(idx_ref, table_ref, out_ref):
    """Gather-as-matmul: out = one_hot(idx) @ block_diag_table (runs on the MXU).

    idx_ref:   VMEM (rows_blk, pack) int32 -- `pack` adjusted row indices per
               output row (block-diagonal offsets already applied in wrapper).
    table_ref: VMEM (pack*n_timesteps, pack*d_model) block-diagonal table.
    out_ref:   VMEM (rows_blk, pack*d_model) lane-dense gathered rows.
    """
    rows_blk, pack = idx_ref.shape
    tbl_rows = table_ref.shape[0]
    dtype = table_ref.dtype

    # Lane iota over the (packed) table rows; compare against each packed slot's
    # index and sum -> one-hot selection matrix. `pack` is tiny (<= 128/d_model),
    # static unroll keeps everything on the VPU.
    iota = jax.lax.broadcasted_iota(jnp.int32, (rows_blk, tbl_rows), 1)
    onehot = jnp.zeros((rows_blk, tbl_rows), dtype=dtype)
    for p in range(pack):
        onehot = onehot + (iota == idx_ref[:, p : p + 1]).astype(dtype)

    out_ref[...] = jnp.dot(
        onehot, table_ref[...], preferred_element_type=jnp.float32
    ).astype(out_ref.dtype)


def learned_position_encode(pos_indicies, emb_table, *, max_rows_per_block=512):
    """Equivalent of LearnedPositionEncoder.forward(pos_indicies)."""
    orig_shape = pos_indicies.shape
    n_timesteps, d_model = emb_table.shape

    # .long() in PyTorch -> integer indices; TPU ints are int32. Clamp instead of
    # raising on out-of-range indices (keeps the packed one-hot block-diagonal).
    idx_flat = jnp.clip(
        pos_indicies.reshape(-1).astype(jnp.int32), 0, n_timesteps - 1
    )
    n = idx_flat.shape[0]

    # Lane-dense packing factor: pack 128/d_model gathered rows per vreg row.
    if d_model < 128 and 128 % d_model == 0:
        pack = 128 // d_model
    else:
        pack = 1

    packed_rows = pl.cdiv(n, pack)
    # Large tiles amortize per-step overhead; a single step for small problems.
    rows_blk = min(max_rows_per_block, _round_up(packed_rows, 8))
    packed_rows_pad = _round_up(packed_rows, rows_blk)
    n_pad = packed_rows_pad * pack

    if n_pad != n:
        idx_flat = jnp.pad(idx_flat, (0, n_pad - n))  # pads gather row 0; sliced off

    # Adjusted indices: packed slot p of each output row selects rows of the
    # block-diagonal table whose nonzero lanes are lane block p.
    adj_idx = (
        idx_flat + (jnp.arange(n_pad, dtype=jnp.int32) % pack) * n_timesteps
    ).reshape(packed_rows_pad, pack)

    # Block-diagonal replicated table: (pack*n_timesteps, pack*d_model).
    packed_table = jax.scipy.linalg.block_diag(*([emb_table] * pack))

    tbl_rows = pack * n_timesteps
    out_width = pack * d_model
    grid = (packed_rows_pad // rows_blk,)

    itemsize = emb_table.dtype.itemsize
    cost = pl.CostEstimate(
        flops=2 * packed_rows_pad * tbl_rows * out_width,
        transcendentals=0,
        bytes_accessed=(
            adj_idx.size * 4
            + tbl_rows * out_width * itemsize
            + packed_rows_pad * out_width * itemsize
        ),
    )

    out = pl.pallas_call(
        _embed_onehot_kernel,
        out_shape=jax.ShapeDtypeStruct((packed_rows_pad, out_width), emb_table.dtype),
        grid_spec=pltpu.PrefetchScalarGridSpec(
            num_scalar_prefetch=0,
            grid=grid,
            in_specs=[
                # Per-step block of packed indices.
                pl.BlockSpec((rows_blk, pack), lambda i: (i, 0)),
                # Grid-invariant (constant index_map): table stays resident in VMEM.
                pl.BlockSpec((tbl_rows, out_width), lambda i: (0, 0)),
            ],
            out_specs=pl.BlockSpec((rows_blk, out_width), lambda i: (i, 0)),
        ),
        compiler_params=pltpu.CompilerParams(
            # v7x: shard independent row blocks across both TensorCores
            # (measured no-op on single-TC v5e/v6e).
            dimension_semantics=("parallel",),
        ),
        cost_estimate=cost,
    )(adj_idx, packed_table)

    # Unpack lanes back to rows, drop padding, restore the input shape.
    return out.reshape(n_pad, d_model)[:n].reshape(*orig_shape, d_model)


if __name__ == "__main__":
    # Module hyperparameters (small, consistent with the forward pass).
    n_timesteps = 16
    d_model = 32
    batch, seq = 2, 8

    key = jax.random.PRNGKey(0)
    k_w, k_i = jax.random.split(key)

    # nn.init.uniform_(self.embeddor.weight) -> U[0, 1)
    emb_table = jax.random.uniform(
        k_w, (n_timesteps, d_model), dtype=jnp.float32, minval=0.0, maxval=1.0
    )

    # Positional indices (any integer dtype; forward casts to long).
    pos_indicies = jax.random.randint(
        k_i, (batch, seq), minval=0, maxval=n_timesteps, dtype=jnp.int32
    )

    out = learned_position_encode(pos_indicies, emb_table)
    out = jax.block_until_ready(out)

    # Reference check (pure JAX gather).
    ref = jnp.take(emb_table, pos_indicies.astype(jnp.int32), axis=0)
    assert out.shape == (batch, seq, d_model), out.shape
    assert out.dtype == emb_table.dtype, out.dtype
    assert jnp.allclose(out, ref), "mismatch vs reference embedding lookup"

    print("KERNEL_OK")
</pallas_src>

<mosaic_0001>
module attributes {stable_mosaic.version = 11 : i64} {
  func.func @_embed_onehot_kernel(%arg0: i32, %arg1: memref<8x4xi32, #tpu.memory_space<vmem>>, %arg2: memref<64x128xf32, #tpu.memory_space<vmem>>, %arg3: memref<8x128xf32, #tpu.memory_space<vmem>>) attributes {dimension_semantics = [#tpu.dimension_semantics<parallel>], iteration_bounds = array<i64: 1>, scalar_prefetch = 0 : i64, scratch_operands = 0 : i64, tpu.core_type = #tpu.core_type<tc>, window_params = [{transform_indices = @transform_0, window_bounds = array<i64: 8, 4>}, {pipeline_mode = #tpu.pipeline_mode<synchronous>, transform_indices = @transform_1, window_bounds = array<i64: 64, 128>}, {transform_indices = @transform_2, window_bounds = array<i64: 8, 128>}]} {
    %0 = tpu.iota {dimensions = array<i32: 1>} : vector<8x64xi32>
    %cst = arith.constant 0.000000e+00 : f32
    %1 = vector.broadcast %cst : f32 to vector<8x64xf32>
    %c0 = arith.constant 0 : index
    %c0_0 = arith.constant 0 : index
    %2 = vector.load %arg1[%c0, %c0_0] : memref<8x4xi32, #tpu.memory_space<vmem>>, vector<8x1xi32>
    %3 = vector.broadcast %2 : vector<8x1xi32> to vector<8x64xi32>
    %4 = arith.cmpi eq, %0, %3 : vector<8x64xi32>
    %5 = arith.extui %4 : vector<8x64xi1> to vector<8x64xi32>
    %6 = arith.sitofp %5 : vector<8x64xi32> to vector<8x64xf32>
    %7 = arith.addf %1, %6 : vector<8x64xf32>
    %c0_1 = arith.constant 0 : index
    %c1 = arith.constant 1 : index
    %8 = vector.load %arg1[%c0_1, %c1] : memref<8x4xi32, #tpu.memory_space<vmem>>, vector<8x1xi32>
    %9 = vector.broadcast %8 : vector<8x1xi32> to vector<8x64xi32>
    %10 = arith.cmpi eq, %0, %9 : vector<8x64xi32>
    %11 = arith.extui %10 : vector<8x64xi1> to vector<8x64xi32>
    %12 = arith.sitofp %11 : vector<8x64xi32> to vector<8x64xf32>
    %13 = arith.addf %7, %12 : vector<8x64xf32>
    %c0_2 = arith.constant 0 : index
    %c2 = arith.constant 2 : index
    %14 = vector.load %arg1[%c0_2, %c2] : memref<8x4xi32, #tpu.memory_space<vmem>>, vector<8x1xi32>
    %15 = vector.broadcast %14 : vector<8x1xi32> to vector<8x64xi32>
    %16 = arith.cmpi eq, %0, %15 : vector<8x64xi32>
    %17 = arith.extui %16 : vector<8x64xi1> to vector<8x64xi32>
    %18 = arith.sitofp %17 : vector<8x64xi32> to vector<8x64xf32>
    %19 = arith.addf %13, %18 : vector<8x64xf32>
    %c0_3 = arith.constant 0 : index
    %c3 = arith.constant 3 : index
    %20 = vector.load %arg1[%c0_3, %c3] : memref<8x4xi32, #tpu.memory_space<vmem>>, vector<8x1xi32>
    %21 = vector.broadcast %20 : vector<8x1xi32> to vector<8x64xi32>
    %22 = arith.cmpi eq, %0, %21 : vector<8x64xi32>
    %23 = arith.extui %22 : vector<8x64xi1> to vector<8x64xi32>
    %24 = arith.sitofp %23 : vector<8x64xi32> to vector<8x64xf32>
    %25 = arith.addf %19, %24 : vector<8x64xf32>
    %c0_4 = arith.constant 0 : index
    %c0_5 = arith.constant 0 : index
    %26 = vector.load %arg2[%c0_4, %c0_5] : memref<64x128xf32, #tpu.memory_space<vmem>>, vector<64x128xf32>
    %cst_6 = arith.constant dense<0.000000e+00> : vector<8x128xf32>
    %27 = tpu.matmul %25, %26, %cst_6 {dimension_numbers = #tpu.dot_dimension_numbers<[1], [0], [0], [1], [0, 0, 1, 1], [], []>} : vector<8x64xf32>, vector<64x128xf32>, vector<8x128xf32> -> vector<8x128xf32>
    %c0_7 = arith.constant 0 : index
    %c0_8 = arith.constant 0 : index
    %28 = vector.load %arg3[%c0_7, %c0_8] : memref<8x128xf32, #tpu.memory_space<vmem>>, vector<8x128xf32>
    tpu.vector_store %arg3[%c0_7, %c0_8], %27 {strides = array<i32>} : memref<8x128xf32, #tpu.memory_space<vmem>>, vector<8x128xf32>,
    return
  }
  func.func @transform_0(%arg0: i32) -> (i32, i32) {
    %c0_i32 = arith.constant 0 : i32
    %c0_i32_0 = arith.constant 0 : i32
    return %arg0, %c0_i32 : i32, i32
  }
  func.func @transform_1(%arg0: i32) -> (i32, i32) {
    %c0_i32 = arith.constant 0 : i32
    %c0_i32_0 = arith.constant 0 : i32
    %c0_i32_1 = arith.constant 0 : i32
    return %c0_i32, %c0_i32_0 : i32, i32
  }
  func.func @transform_2(%arg0: i32) -> (i32, i32) {
    %c0_i32 = arith.constant 0 : i32
    %c0_i32_0 = arith.constant 0 : i32
    return %arg0, %c0_i32 : i32, i32
  }
}

</mosaic_0001>

<llo_original>
// kernel: tpu_custom_call.1
$region0: #{tpu_custom_call.1}
  #allocation0 [shape = 'u32[]', space=smem, size = 0x4, offset = 0x4, fixed_abs, tag = 'smem constant byte address 0x4 - core index']
  #allocation1 [shape = 'u32[72,128]{1,0:T(1,128)}', space=vmem, size = 0x9000, scoped, tag = 'internal scratch']
  %s0 = inlined_call_operand.vmem [shape: s32[8,4], index: 0, kind: input, shape index: {}]
  %s1 = inlined_call_operand.hbm [shape: f32[64,128], index: 1, kind: input, shape index: {}]
  %s2 = inlined_call_operand.hbm [shape: f32[8,128], index: 2, kind: output, shape index: {}]
  %s3 = sld [smem:[#allocation0]]
  $region22: #{tpu_custom_call.1} parent=0
    _
  %s5 = ssub.s32 1, %s3
  %s6 = scalar_select 0, %s5, %s3
  $region1: #{tpu_custom_call.1} parent=0
    #allocation2 [shape = 'u8[32768]{0}', space=vmem, size = 0x8000, scoped, tag = 'input window, operand 1, single buffered']
    #allocation3 [shape = 's32[1]{0}', space=sflag, size = 0x4, scoped, tag = 'scoped memory for tpu_custom_call.1']
    #allocation4 [shape = 's32[1]{0}', space=sflag, size = 0x4, scoped, tag = 'scoped memory for tpu_custom_call.1']
    #allocation5 [shape = 'u8[4096]{0}', space=vmem, size = 0x1000, scoped, tag = 'output window, operand 0, single buffered']
    %7 = vsyncpa [#allocation3], 0
    %8 = vsyncpa [#allocation4], 0
    // Predicated region
    $region2: #{tpu_custom_call.1} parent=1 // pred_check
      _
    $region3: #{tpu_custom_call.1} parent=1 // pred_check_branch
      %10 = sbr.rel (0) target = $region5
    $region4: #{tpu_custom_call.1} parent=1 // pred_region
      _
    $region5: #{tpu_custom_call.1} parent=1 // pred_fallthru
      _
    // Predicated region
    $region6: #{tpu_custom_call.1} parent=1 // pred_check
      _
    $region7: #{tpu_custom_call.1} parent=1 // pred_check_branch
      %12 = sbr.rel (0) target = $region9
    $region8: #{tpu_custom_call.1} parent=1 // pred_region
      %14 = vsyncadd [#allocation3], 0
      %s15 = sshll.u32 %s1, 4
      %s16 = int_to_ptr.hbm [resolvable:$true] %s15
      %s17 = sshll.u32 [#allocation2], 4
      %s18 = int_to_ptr.vmem [resolvable:$true] %s17
      %23 = dma.hbm_to_vmem [thread:$0]  %s16, 1024, %s18, [#allocation3], 128, 128, 8
    $region9: #{tpu_custom_call.1} parent=1 // pred_fallthru
      _
    // Predicated region
    $region10: #{tpu_custom_call.1} parent=1 // pred_check
      _
    $region11: #{tpu_custom_call.1} parent=1 // pred_check_branch
      %25 = sbr.rel (0) target = $region13
    $region12: #{tpu_custom_call.1} parent=1 // pred_region
      %27 = dma.done [#allocation3], 1024
    $region13: #{tpu_custom_call.1} parent=1 // pred_fallthru
      _
    %v28 = vlaneseq
    %v29 = vand.u32 %v28, 127
    %v30 = vld [vmem:[%s0] sm:$0xff]
    %31 = vset.pattern.permute.xlu0 0
    %32 = vperm.xlu0 %31, %v30
    %v33 = vpop.permute.xlu0 %32
    %vm34 = vcmp.eq.s32.totalorder %v29, %v33
    %v35 = vsel %vm34, 1, 0
    %v36 = vcvt.s32.f32 %v35
    %v37 = vadd.f32 %v36, 0.0
    %38 = vset.pattern.permute.xlu0 1
    %39 = vperm.xlu0 %38, %v30
    %v40 = vpop.permute.xlu0 %39
    %vm41 = vcmp.eq.s32.totalorder %v29, %v40
    %v42 = vsel %vm41, 1, 0
    %v43 = vcvt.s32.f32 %v42
    %v44 = vadd.f32 %v37, %v43
    %45 = vset.pattern.permute.xlu0 2
    %46 = vperm.xlu0 %45, %v30
    %v47 = vpop.permute.xlu0 %46
    %vm48 = vcmp.eq.s32.totalorder %v29, %v47
    %v49 = vsel %vm48, 1, 0
    %v50 = vcvt.s32.f32 %v49
    %v51 = vadd.f32 %v44, %v50
    %52 = vset.pattern.permute.xlu0 3
    %53 = vperm.xlu0 %52, %v30
    %v54 = vpop.permute.xlu0 %53
    %vm55 = vcmp.eq.s32.totalorder %v29, %v54
    %v56 = vsel %vm55, 1, 0
    %v57 = vcvt.s32.f32 %v56
    %v58 = vadd.f32 %v51, %v57
    %v59 = vld [vmem:[#allocation2] sm:$0xff]
    %v60 = vld [vmem:[#allocation2 + $0x8] sm:$0xff]
    %v61 = vld [vmem:[#allocation2 + $0x10] sm:$0xff]
    %v62 = vld [vmem:[#allocation2 + $0x18] sm:$0xff]
    %v63 = vld [vmem:[#allocation2 + $0x20] sm:$0xff]
    %v64 = vld [vmem:[#allocation2 + $0x28] sm:$0xff]
    %v65 = vld [vmem:[#allocation2 + $0x30] sm:$0xff]
    %v66 = vld [vmem:[#allocation2 + $0x38] sm:$0xff]
    %vm67 = vcmask 523264
    %v69 = vsel %vm67, %v58, 0
    %71 = vmatpush.msra.mxu0 0.0
    %72 = vmatpush.msra.mxu0 0.0
    %73 = vmatpush.msra.mxu0 0.0
    %74 = vmatpush.msra.mxu0 0.0
    %75 = vmatpush.msra.mxu0 0.0
    %76 = vmatpush.msra.mxu0 0.0
    %77 = vmatpush.msra.mxu0 0.0
    %78 = vmatpush.msra.mxu0 0.0
    %79 = vmatpush.msra.mxu0 %v66
    %80 = vmatpush.msra.mxu0 %v65
    %81 = vmatpush.msra.mxu0 %v64
    %82 = vmatpush.msra.mxu0 %v63
    %83 = vmatpush.msra.mxu0 %v62
    %84 = vmatpush.msra.mxu0 %v61
    %85 = vmatpush.msra.mxu0 %v60
    %86 = vmatpush.msra.mxu0 %v59
    %87 = vmatmul.f32.gmra.mxu0 %v69
    %v88 = vpop.f32.mrf.mxu0
    %v89 = vadd.f32 0.0, %v88
    %90 = vdwg.mxu0
    %91 = vst [vmem:[#allocation5] sm:$0xff] %v89
    // Predicated region
    $region14: #{tpu_custom_call.1} parent=1 // pred_check
      _
    $region15: #{tpu_custom_call.1} parent=1 // pred_check_branch
      %93 = sbr.rel (0) target = $region17
    $region16: #{tpu_custom_call.1} parent=1 // pred_region
      %95 = vsyncadd [#allocation4], 0
      %s97 = sshll.u32 [#allocation5], 4
      %s98 = int_to_ptr.vmem [resolvable:$true] %s97
      %s99 = sshll.u32 %s2, 4
      %s100 = int_to_ptr.hbm [resolvable:$true] %s99
      %102 = dma.vmem_to_hbm [thread:$0]  %s98, 128, %s100, [#allocation4]
    $region17: #{tpu_custom_call.1} parent=1 // pred_fallthru
      _
    // Predicated region
    $region18: #{tpu_custom_call.1} parent=1 // pred_check
      _
    $region19: #{tpu_custom_call.1} parent=1 // pred_check_branch
      %104 = sbr.rel (0) target = $region21
    $region20: #{tpu_custom_call.1} parent=1 // pred_region
      %106 = dma.done [#allocation4], 128
    $region21: #{tpu_custom_call.1} parent=1 // pred_fallthru
      _
    %107 = vsyncpa [#allocation3], 1
    %108 = vsyncpa [#allocation4], 1

</llo_original>
